<compile_context>
chip_gen: v7x
topology: tpu7x:2x2x1
jax: 0.10.0
libtpu: 0.0.40
codegen_flags: <defaults>
</compile_context>

<pallas_src>
import jax
import jax.numpy as jnp
from jax.experimental import pallas as pl
from jax.experimental.pallas import tpu as pltpu


_LANE = 128       # lane width (last-dim tiling unit)
_SUBLANE = 8      # f32 sublane tiling unit
_NEG_BIG = -1e30  # bias value for padded classes -> exp() underflows to 0


# ----------------------------------------------------------------------------
# Kernel: logits accumulated over the (optional) K grid axis, softmax + store
# on the last K step.  Output block is unpadded (tile_n, C).
# ----------------------------------------------------------------------------
def _logreg_kernel(x_ref, w_ref, b_ref, o_ref, acc_ref):
    k = pl.program_id(1)

    @pl.when(k == 0)
    def _init():
        acc_ref[...] = jnp.zeros_like(acc_ref)

    acc_ref[...] += jnp.dot(x_ref[...], w_ref[...],
                            preferred_element_type=jnp.float32)

    @pl.when(k == pl.num_programs(1) - 1)
    def _finish():
        logits = acc_ref[...] + b_ref[...]            # (tile_n, Cp) + (1, Cp)
        m = jnp.max(logits, axis=-1, keepdims=True)
        e = jnp.exp(logits - m)
        denom = jnp.sum(e, axis=-1, keepdims=True)
        probs = e / denom                             # exact; HBM-bound => free
        c_out = o_ref.shape[-1]
        o_ref[...] = probs[:, :c_out].astype(o_ref.dtype)


# ----------------------------------------------------------------------------
# Tiling / VMEM planning
# ----------------------------------------------------------------------------
def _round_up(x, m):
    return (x + m - 1) // m * m


def _vmem_capacity_bytes():
    """Generation-aware VMEM query; conservative fallback works on every chip."""
    try:
        return int(pltpu.get_tpu_info().vmem_capacity_bytes)
    except Exception:
        return 64 << 20  # v7x per-TensorCore VMEM (smallest generation)


def _plan(n, d, c, c_pad, budget):
    """Return (tile_n, tile_k, w_resident)."""
    n_rounded = _round_up(n, _SUBLANE)

    # Path 1: W (+b) fully resident, single-buffered.
    w_bytes_resident = (d * c_pad + c_pad) * 4
    if w_bytes_resident <= budget // 2:
        w_resident = True
        tile_k = d
        avail = budget - w_bytes_resident
        # 2 bufs X rows + 2 bufs output rows (width c) + f32 accumulator (Cp).
        row_bytes = (2 * d + 2 * c + c_pad) * 4
    else:
        # Path 2: stream W along the feature (K) dim with an accumulator.
        # TODO(synk): very large C (Cp blocks that alone exceed VMEM) would
        # additionally need class-dim tiling with an online softmax.
        w_resident = False
        tile_k = 512
        while tile_k > _LANE and 2 * tile_k * c_pad * 4 > budget // 3:
            tile_k //= 2
        avail = budget - 2 * (tile_k * c_pad + c_pad) * 4
        row_bytes = (2 * tile_k + 2 * c + c_pad) * 4

    tile_n = (max(avail, 0) // row_bytes) // _SUBLANE * _SUBLANE
    tile_n = max(_SUBLANE, min(tile_n, 8192, n_rounded))

    # Keep >= ~4 batch steps when there is enough work so the "parallel" batch
    # axis can shard across TensorCores (v7x) and the pipeline has overlap.
    min_steps = 4
    if n_rounded >= min_steps * 512:
        cap = _round_up(-(-n_rounded // min_steps), _SUBLANE)
        tile_n = min(tile_n, cap)

    # Prefer a tile_n that divides the (rounded) batch: no padded rows and no
    # wrapper-side row slice (extra HBM pass) afterwards.
    if n_rounded % tile_n:
        for t in range(tile_n, max(_SUBLANE, tile_n // 2) - 1, -_SUBLANE):
            if n_rounded % t == 0:
                tile_n = t
                break

    return tile_n, tile_k, w_resident


# ----------------------------------------------------------------------------
# Wrapper
# ----------------------------------------------------------------------------
def pt_logreg_forward(x, w, b):
    """softmax(x @ w + b, axis=1) as a tiled, pipelined Pallas TPU kernel."""
    n, d = x.shape
    d2, c = w.shape
    assert d == d2 and b.shape == (c,)

    x = x.astype(jnp.float32)
    w = w.astype(jnp.float32)
    b = b.astype(jnp.float32)

    # Lane-dense padded class dim for the matmul / softmax reductions only;
    # the OUTPUT stays unpadded (width c).
    c_pad = _round_up(max(c, _LANE), _LANE)
    if c_pad != c:
        w = jnp.pad(w, ((0, 0), (0, c_pad - c)))                  # zero columns
        b = jnp.pad(b, (0, c_pad - c), constant_values=_NEG_BIG)  # -> prob 0
    b2 = b.reshape(1, c_pad)

    # Generation-aware VMEM budget: ~96 MiB scoped on v5e/v6e (128 MiB phys),
    # ~48 MiB on v7x (64 MiB phys), conservative fallback if query fails.
    vmem_cap = _vmem_capacity_bytes()
    vmem_limit = min(vmem_cap * 3 // 4, 96 << 20)
    budget = max(vmem_limit - (4 << 20), 8 << 20)

    tile_n, tile_k, w_resident = _plan(n, d, c, c_pad, budget)

    # Batch padding (only when no dividing tile exists / n % 8 != 0).
    n_pad = pl.cdiv(n, tile_n) * tile_n
    if n_pad != n:
        x = jnp.pad(x, ((0, n_pad - n), (0, 0)))     # zero rows, sliced off

    # Feature-dim padding only when W is streamed along K (zeros => exact).
    d_pad = d if w_resident else pl.cdiv(d, tile_k) * tile_k
    if d_pad != d:
        x = jnp.pad(x, ((0, 0), (0, d_pad - d)))
        w = jnp.pad(w, ((0, d_pad - d), (0, 0)))

    grid = (n_pad // tile_n, d_pad // tile_k)

    cost = pl.CostEstimate(
        flops=2 * n_pad * d_pad * c_pad,
        transcendentals=n_pad * c_pad,
        bytes_accessed=4 * (n_pad * d_pad + d_pad * c_pad + c_pad + n_pad * c),
    )

    def build(use_single_buffer_hint):
        const_idx = lambda i, k: (0, 0)
        w_idx = const_idx if w_resident else (lambda i, k: (k, 0))
        w_kwargs = {}
        b_kwargs = {}
        if use_single_buffer_hint:
            # Resident operands never change block -> 1 buffer is enough;
            # halves their VMEM footprint (frees room for bigger X/O tiles).
            b_kwargs = dict(pipeline_mode=pl.Buffered(1))
            if w_resident:
                w_kwargs = dict(pipeline_mode=pl.Buffered(1))
        return pl.pallas_call(
            _logreg_kernel,
            out_shape=jax.ShapeDtypeStruct((n_pad, c), jnp.float32),
            grid_spec=pltpu.PrefetchScalarGridSpec(
                num_scalar_prefetch=0,
                grid=grid,
                in_specs=[
                    pl.BlockSpec((tile_n, tile_k), lambda i, k: (i, k)),  # X
                    pl.BlockSpec((tile_k, c_pad), w_idx, **w_kwargs),     # W
                    pl.BlockSpec((1, c_pad), const_idx, **b_kwargs),      # b
                ],
                out_specs=pl.BlockSpec((tile_n, c), lambda i, k: (i, 0)),
                scratch_shapes=[pltpu.VMEM((tile_n, c_pad), jnp.float32)],
            ),
            compiler_params=pltpu.CompilerParams(
                dimension_semantics=("parallel", "arbitrary"),
                vmem_limit_bytes=vmem_limit,
            ),
            cost_estimate=cost,
        )

    try:
        out = build(True)(x, w, b2)
    except Exception:
        # Fallback if single-buffering via pipeline_mode is not supported.
        out = build(False)(x, w, b2)

    return out[:n] if n_pad != n else out


# TODO(synk): get_loss (cross-entropy + L2) is training-only and not part of
# forward(); not implemented here.


if __name__ == "__main__":
    # Small shapes consistent with the module: N datapoints of dim D, C classes.
    N, D, C = 8, 32, 16

    key = jax.random.PRNGKey(0)
    kx, kw = jax.random.split(key)

    # Deterministic parameter init (mirrors torch.randn for W, zeros for b).
    W = jax.random.normal(kw, (D, C), dtype=jnp.float32)
    b = jnp.zeros((C,), dtype=jnp.float32)
    X = jax.random.normal(kx, (N, D), dtype=jnp.float32)

    out = pt_logreg_forward(X, W, b)
    out = jax.block_until_ready(out)

    # Plain-JAX reference at full f32 matmul precision.
    logits_ref = jnp.dot(X, W, precision=jax.lax.Precision.HIGHEST) + b
    ref = jax.nn.softmax(logits_ref, axis=1)

    assert out.shape == (N, C)
    assert jnp.allclose(out, ref, atol=1e-4, rtol=1e-4)
    # Exact row normalization -> rows sum to 1 to f32 rounding.
    assert jnp.allclose(jnp.sum(out, axis=1), jnp.ones((N,)), atol=1e-5)

    print("KERNEL_OK")
</pallas_src>

<mosaic_0001>
module attributes {stable_mosaic.version = 11 : i64} {
  func.func @_logreg_kernel(%arg0: i32, %arg1: i32, %arg2: memref<8x32xf32, #tpu.memory_space<vmem>>, %arg3: memref<32x128xf32, #tpu.memory_space<vmem>>, %arg4: memref<1x128xf32, #tpu.memory_space<vmem>>, %arg5: memref<8x16xf32, #tpu.memory_space<vmem>>, %arg6: memref<8x128xf32, #tpu.memory_space<vmem>>) attributes {dimension_semantics = [#tpu.dimension_semantics<parallel>, #tpu.dimension_semantics<arbitrary>], iteration_bounds = array<i64: 1, 1>, scalar_prefetch = 0 : i64, scratch_operands = 1 : i64, tpu.core_type = #tpu.core_type<tc>, window_params = [{transform_indices = @transform_0, window_bounds = array<i64: 8, 32>}, {pipeline_mode = #tpu.pipeline_mode<synchronous>, transform_indices = @transform_1, window_bounds = array<i64: 32, 128>}, {pipeline_mode = #tpu.pipeline_mode<synchronous>, transform_indices = @transform_2, window_bounds = array<i64: 1, 128>}, {transform_indices = @transform_3, window_bounds = array<i64: 8, 16>}]} {
    %c0_i32 = arith.constant 0 : i32
    %0 = arith.cmpi eq, %arg1, %c0_i32 : i32
    %1 = arith.extui %0 : i1 to i32
    %c0_i32_0 = arith.constant 0 : i32
    %2 = arith.cmpi ne, %1, %c0_i32_0 : i32
    scf.if %2 {
      %cst_10 = arith.constant 0.000000e+00 : f32
      %12 = vector.broadcast %cst_10 : f32 to vector<8x128xf32>
      %c0_11 = arith.constant 0 : index
      %c0_12 = arith.constant 0 : index
      %13 = vector.load %arg6[%c0_11, %c0_12] : memref<8x128xf32, #tpu.memory_space<vmem>>, vector<8x128xf32>
      tpu.vector_store %arg6[%c0_11, %c0_12], %12 {strides = array<i32>} : memref<8x128xf32, #tpu.memory_space<vmem>>, vector<8x128xf32>,
    } else {
    }
    %c0 = arith.constant 0 : index
    %c0_1 = arith.constant 0 : index
    %3 = vector.load %arg6[%c0, %c0_1] : memref<8x128xf32, #tpu.memory_space<vmem>>, vector<8x128xf32>
    %c0_2 = arith.constant 0 : index
    %c0_3 = arith.constant 0 : index
    %4 = vector.load %arg2[%c0_2, %c0_3] : memref<8x32xf32, #tpu.memory_space<vmem>>, vector<8x32xf32>
    %c0_4 = arith.constant 0 : index
    %c0_5 = arith.constant 0 : index
    %5 = vector.load %arg3[%c0_4, %c0_5] : memref<32x128xf32, #tpu.memory_space<vmem>>, vector<32x128xf32>
    %cst = arith.constant dense<0.000000e+00> : vector<8x128xf32>
    %6 = tpu.matmul %4, %5, %cst {dimension_numbers = #tpu.dot_dimension_numbers<[1], [0], [0], [1], [0, 0, 1, 1], [], []>} : vector<8x32xf32>, vector<32x128xf32>, vector<8x128xf32> -> vector<8x128xf32>
    %7 = arith.addf %3, %6 : vector<8x128xf32>
    %c0_6 = arith.constant 0 : index
    %c0_7 = arith.constant 0 : index
    %8 = vector.load %arg6[%c0_6, %c0_7] : memref<8x128xf32, #tpu.memory_space<vmem>>, vector<8x128xf32>
    tpu.vector_store %arg6[%c0_6, %c0_7], %7 {strides = array<i32>} : memref<8x128xf32, #tpu.memory_space<vmem>>, vector<8x128xf32>,
    %c0_i32_8 = arith.constant 0 : i32
    %9 = arith.cmpi eq, %arg1, %c0_i32_8 : i32
    %10 = arith.extui %9 : i1 to i32
    %c0_i32_9 = arith.constant 0 : i32
    %11 = arith.cmpi ne, %10, %c0_i32_9 : i32
    scf.if %11 {
      %c0_10 = arith.constant 0 : index
      %c0_11 = arith.constant 0 : index
      %12 = vector.load %arg6[%c0_10, %c0_11] : memref<8x128xf32, #tpu.memory_space<vmem>>, vector<8x128xf32>
      %c0_12 = arith.constant 0 : index
      %c0_13 = arith.constant 0 : index
      %13 = vector.load %arg4[%c0_12, %c0_13] : memref<1x128xf32, #tpu.memory_space<vmem>>, vector<1x128xf32>
      %14 = vector.broadcast %13 : vector<1x128xf32> to vector<8x128xf32>
      %15 = arith.addf %12, %14 : vector<8x128xf32>
      %cst_14 = arith.constant dense<0xFF800000> : vector<8xf32>
      %16 = vector.multi_reduction <maximumf>, %15, %cst_14 [1] : vector<8x128xf32> to vector<8xf32>
      %17 = vector.shape_cast %16 : vector<8xf32> to vector<8x1xf32>
      %18 = vector.broadcast %17 : vector<8x1xf32> to vector<8x128xf32>
      %19 = arith.subf %15, %18 : vector<8x128xf32>
      %20 = math.exp %19 : vector<8x128xf32>
      %cst_15 = arith.constant dense<0.000000e+00> : vector<8xf32>
      %21 = vector.multi_reduction <add>, %20, %cst_15 [1] : vector<8x128xf32> to vector<8xf32>
      %22 = vector.shape_cast %21 : vector<8xf32> to vector<8x1xf32>
      %23 = vector.broadcast %22 : vector<8x1xf32> to vector<8x128xf32>
      %24 = arith.divf %20, %23 : vector<8x128xf32>
      %25 = vector.extract_strided_slice %24 {offsets = [0, 0], sizes = [8, 16], strides = [1, 1]} : vector<8x128xf32> to vector<8x16xf32>
      %c0_16 = arith.constant 0 : index
      %c0_17 = arith.constant 0 : index
      %26 = vector.load %arg5[%c0_16, %c0_17] : memref<8x16xf32, #tpu.memory_space<vmem>>, vector<8x16xf32>
      tpu.vector_store %arg5[%c0_16, %c0_17], %25 {strides = array<i32>} : memref<8x16xf32, #tpu.memory_space<vmem>>, vector<8x16xf32>,
    } else {
    }
    return
  }
  func.func @transform_0(%arg0: i32, %arg1: i32) -> (i32, i32) {
    %c0_i32 = arith.constant 0 : i32
    return %arg0, %arg1 : i32, i32
  }
  func.func @transform_1(%arg0: i32, %arg1: i32) -> (i32, i32) {
    %c0_i32 = arith.constant 0 : i32
    %c0_i32_0 = arith.constant 0 : i32
    %c0_i32_1 = arith.constant 0 : i32
    return %c0_i32, %c0_i32_0 : i32, i32
  }
  func.func @transform_2(%arg0: i32, %arg1: i32) -> (i32, i32) {
    %c0_i32 = arith.constant 0 : i32
    %c0_i32_0 = arith.constant 0 : i32
    %c0_i32_1 = arith.constant 0 : i32
    return %c0_i32, %c0_i32_0 : i32, i32
  }
  func.func @transform_3(%arg0: i32, %arg1: i32) -> (i32, i32) {
    %c0_i32 = arith.constant 0 : i32
    %c0_i32_0 = arith.constant 0 : i32
    return %arg0, %c0_i32 : i32, i32
  }
}

module attributes {stable_mosaic.version = 11 : i64} {
  func.func @_logreg_kernel(%arg0: i32, %arg1: i32, %arg2: memref<8x32xf32, #tpu.memory_space<vmem>>, %arg3: memref<32x128xf32, #tpu.memory_space<vmem>>, %arg4: memref<1x128xf32, #tpu.memory_space<vmem>>, %arg5: memref<8x16xf32, #tpu.memory_space<vmem>>, %arg6: memref<8x128xf32, #tpu.memory_space<vmem>>) attributes {dimension_semantics = [#tpu.dimension_semantics<parallel>, #tpu.dimension_semantics<arbitrary>], iteration_bounds = array<i64: 1, 1>, scalar_prefetch = 0 : i64, scratch_operands = 1 : i64, tpu.core_type = #tpu.core_type<tc>, window_params = [{transform_indices = @transform_0, window_bounds = array<i64: 8, 32>}, {pipeline_mode = #tpu.pipeline_mode<synchronous>, transform_indices = @transform_1, window_bounds = array<i64: 32, 128>}, {pipeline_mode = #tpu.pipeline_mode<synchronous>, transform_indices = @transform_2, window_bounds = array<i64: 1, 128>}, {transform_indices = @transform_3, window_bounds = array<i64: 8, 16>}]} {
    %c0_i32 = arith.constant 0 : i32
    %0 = arith.cmpi eq, %arg1, %c0_i32 : i32
    %1 = arith.extui %0 : i1 to i32
    %c0_i32_0 = arith.constant 0 : i32
    %2 = arith.cmpi ne, %1, %c0_i32_0 : i32
    scf.if %2 {
      %cst_10 = arith.constant 0.000000e+00 : f32
      %12 = vector.broadcast %cst_10 : f32 to vector<8x128xf32>
      %c0_11 = arith.constant 0 : index
      %c0_12 = arith.constant 0 : index
      %13 = vector.load %arg6[%c0_11, %c0_12] : memref<8x128xf32, #tpu.memory_space<vmem>>, vector<8x128xf32>
      tpu.vector_store %arg6[%c0_11, %c0_12], %12 {strides = array<i32>} : memref<8x128xf32, #tpu.memory_space<vmem>>, vector<8x128xf32>,
    } else {
    }
    %c0 = arith.constant 0 : index
    %c0_1 = arith.constant 0 : index
    %3 = vector.load %arg6[%c0, %c0_1] : memref<8x128xf32, #tpu.memory_space<vmem>>, vector<8x128xf32>
    %c0_2 = arith.constant 0 : index
    %c0_3 = arith.constant 0 : index
    %4 = vector.load %arg2[%c0_2, %c0_3] : memref<8x32xf32, #tpu.memory_space<vmem>>, vector<8x32xf32>
    %c0_4 = arith.constant 0 : index
    %c0_5 = arith.constant 0 : index
    %5 = vector.load %arg3[%c0_4, %c0_5] : memref<32x128xf32, #tpu.memory_space<vmem>>, vector<32x128xf32>
    %cst = arith.constant dense<0.000000e+00> : vector<8x128xf32>
    %6 = tpu.matmul %4, %5, %cst {dimension_numbers = #tpu.dot_dimension_numbers<[1], [0], [0], [1], [0, 0, 1, 1], [], []>} : vector<8x32xf32>, vector<32x128xf32>, vector<8x128xf32> -> vector<8x128xf32>
    %7 = arith.addf %3, %6 : vector<8x128xf32>
    %c0_6 = arith.constant 0 : index
    %c0_7 = arith.constant 0 : index
    %8 = vector.load %arg6[%c0_6, %c0_7] : memref<8x128xf32, #tpu.memory_space<vmem>>, vector<8x128xf32>
    tpu.vector_store %arg6[%c0_6, %c0_7], %7 {strides = array<i32>} : memref<8x128xf32, #tpu.memory_space<vmem>>, vector<8x128xf32>,
    %c0_i32_8 = arith.constant 0 : i32
    %9 = arith.cmpi eq, %arg1, %c0_i32_8 : i32
    %10 = arith.extui %9 : i1 to i32
    %c0_i32_9 = arith.constant 0 : i32
    %11 = arith.cmpi ne, %10, %c0_i32_9 : i32
    scf.if %11 {
      %c0_10 = arith.constant 0 : index
      %c0_11 = arith.constant 0 : index
      %12 = vector.load %arg6[%c0_10, %c0_11] : memref<8x128xf32, #tpu.memory_space<vmem>>, vector<8x128xf32>
      %c0_12 = arith.constant 0 : index
      %c0_13 = arith.constant 0 : index
      %13 = vector.load %arg4[%c0_12, %c0_13] : memref<1x128xf32, #tpu.memory_space<vmem>>, vector<1x128xf32>
      %14 = vector.broadcast %13 : vector<1x128xf32> to vector<8x128xf32>
      %15 = arith.addf %12, %14 : vector<8x128xf32>
      %cst_14 = arith.constant dense<0xFF800000> : vector<8xf32>
      %16 = vector.multi_reduction <maximumf>, %15, %cst_14 [1] : vector<8x128xf32> to vector<8xf32>
      %17 = vector.shape_cast %16 : vector<8xf32> to vector<8x1xf32>
      %18 = vector.broadcast %17 : vector<8x1xf32> to vector<8x128xf32>
      %19 = arith.subf %15, %18 : vector<8x128xf32>
      %20 = math.exp %19 : vector<8x128xf32>
      %cst_15 = arith.constant dense<0.000000e+00> : vector<8xf32>
      %21 = vector.multi_reduction <add>, %20, %cst_15 [1] : vector<8x128xf32> to vector<8xf32>
      %22 = vector.shape_cast %21 : vector<8xf32> to vector<8x1xf32>
      %23 = vector.broadcast %22 : vector<8x1xf32> to vector<8x128xf32>
      %24 = arith.divf %20, %23 : vector<8x128xf32>
      %25 = vector.extract_strided_slice %24 {offsets = [0, 0], sizes = [8, 16], strides = [1, 1]} : vector<8x128xf32> to vector<8x16xf32>
      %c0_16 = arith.constant 0 : index
      %c0_17 = arith.constant 0 : index
      %26 = vector.load %arg5[%c0_16, %c0_17] : memref<8x16xf32, #tpu.memory_space<vmem>>, vector<8x16xf32>
      tpu.vector_store %arg5[%c0_16, %c0_17], %25 {strides = array<i32>} : memref<8x16xf32, #tpu.memory_space<vmem>>, vector<8x16xf32>,
    } else {
    }
    return
  }
  func.func @transform_0(%arg0: i32, %arg1: i32) -> (i32, i32) {
    %c0_i32 = arith.constant 0 : i32
    return %arg0, %arg1 : i32, i32
  }
  func.func @transform_1(%arg0: i32, %arg1: i32) -> (i32, i32) {
    %c0_i32 = arith.constant 0 : i32
    %c0_i32_0 = arith.constant 0 : i32
    %c0_i32_1 = arith.constant 0 : i32
    return %c0_i32, %c0_i32_0 : i32, i32
  }
  func.func @transform_2(%arg0: i32, %arg1: i32) -> (i32, i32) {
    %c0_i32 = arith.constant 0 : i32
    %c0_i32_0 = arith.constant 0 : i32
    %c0_i32_1 = arith.constant 0 : i32
    return %c0_i32, %c0_i32_0 : i32, i32
  }
  func.func @transform_3(%arg0: i32, %arg1: i32) -> (i32, i32) {
    %c0_i32 = arith.constant 0 : i32
    %c0_i32_0 = arith.constant 0 : i32
    return %arg0, %c0_i32 : i32, i32
  }
}

</mosaic_0001>

<llo_original>
// kernel: tpu_custom_call.1
$region0: #{tpu_custom_call.1}
  #allocation0 [shape = 'u32[]', space=smem, size = 0x4, offset = 0x4, fixed_abs, tag = 'smem constant byte address 0x4 - core index']
  #allocation1 [shape = 'u32[144,128]{1,0:T(1,128)}', space=vmem, size = 0x12000, scoped, tag = 'internal scratch']
  #allocation2 [shape = 'f32[8,128]{1,0:T(8,128)}', space=vmem, size = 0x1000, scoped, tag = 'scratch operand']
  %s0 = inlined_call_operand.hbm [shape: f32[8,32], index: 0, kind: input, shape index: {}]
  %s1 = inlined_call_operand.hbm [shape: f32[32,128], index: 1, kind: input, shape index: {}]
  %s2 = inlined_call_operand.vmem [shape: f32[1,128], index: 2, kind: input, shape index: {}]
  %s3 = inlined_call_operand.hbm [shape: f32[8,16], index: 3, kind: output, shape index: {}]
  %s4 = sld [smem:[#allocation0]]
  $region38: #{tpu_custom_call.1} parent=0
    _
  %s6 = ssub.s32 1, %s4
  %s7 = scalar_select 0, %s6, %s4
  $region1: #{tpu_custom_call.1} parent=0
    #allocation3 [shape = 'u8[4096]{0}', space=vmem, size = 0x1000, scoped, tag = 'input window, operand 0, single buffered']
    #allocation4 [shape = 's32[1]{0}', space=sflag, size = 0x4, scoped, tag = 'scoped memory for tpu_custom_call.1']
    #allocation5 [shape = 's32[1]{0}', space=sflag, size = 0x4, scoped, tag = 'scoped memory for tpu_custom_call.1']
    #allocation6 [shape = 'u8[16384]{0}', space=vmem, size = 0x4000, scoped, tag = 'input window, operand 1, single buffered']
    #allocation7 [shape = 's32[1]{0}', space=sflag, size = 0x4, scoped, tag = 'scoped memory for tpu_custom_call.1']
    #allocation8 [shape = 'u8[4096]{0}', space=vmem, size = 0x1000, scoped, tag = 'output window, operand 0, single buffered']
    %8 = vsyncpa [#allocation4], 0
    %9 = vsyncpa [#allocation7], 0
    %10 = vsyncpa [#allocation5], 0
    // Predicated region
    $region2: #{tpu_custom_call.1} parent=1 // pred_check
      _
    $region3: #{tpu_custom_call.1} parent=1 // pred_check_branch
      %12 = sbr.rel (0) target = $region5
    $region4: #{tpu_custom_call.1} parent=1 // pred_region
      %s14 = ssub.s32 128, 128
      %15 = vsyncadd [#allocation4], %s14
      %s17 = sshll.u32 [#allocation3], 4
      %s18 = int_to_ptr.vmem [resolvable:$true] %s17
      %20 = dma.hbm_to_vmem [thread:$0]  %s0, 128, %s18, [#allocation4]
    $region5: #{tpu_custom_call.1} parent=1 // pred_fallthru
      _
    // Predicated region
    $region6: #{tpu_custom_call.1} parent=1 // pred_check
      _
    $region7: #{tpu_custom_call.1} parent=1 // pred_check_branch
      %22 = sbr.rel (0) target = $region9
    $region8: #{tpu_custom_call.1} parent=1 // pred_region
      %s24 = ssub.s32 512, 512
      %25 = vsyncadd [#allocation7], %s24
      %s26 = sshll.u32 [#allocation6], 4
      %s27 = int_to_ptr.vmem [resolvable:$true] %s26
      %32 = dma.hbm_to_vmem [thread:$0]  %s1, 512, %s27, [#allocation7], 128, 128, 8
    $region9: #{tpu_custom_call.1} parent=1 // pred_fallthru
      _
    // Predicated region
    $region10: #{tpu_custom_call.1} parent=1 // pred_check
      _
    $region11: #{tpu_custom_call.1} parent=1 // pred_check_branch
      %34 = sbr.rel (0) target = $region13
    $region12: #{tpu_custom_call.1} parent=1 // pred_region
      _
    $region13: #{tpu_custom_call.1} parent=1 // pred_fallthru
      _
    // Predicated region
    $region14: #{tpu_custom_call.1} parent=1 // pred_check
      _
    $region15: #{tpu_custom_call.1} parent=1 // pred_check_branch
      %36 = sbr.rel (0) target = $region17
    $region16: #{tpu_custom_call.1} parent=1 // pred_region
      %37 = dma.done [#allocation4], 128
    $region17: #{tpu_custom_call.1} parent=1 // pred_fallthru
      _
    // Predicated region
    $region18: #{tpu_custom_call.1} parent=1 // pred_check
      _
    $region19: #{tpu_custom_call.1} parent=1 // pred_check_branch
      %39 = sbr.rel (0) target = $region21
    $region20: #{tpu_custom_call.1} parent=1 // pred_region
      %40 = dma.done [#allocation7], 512
    $region21: #{tpu_custom_call.1} parent=1 // pred_fallthru
      _
    %p41 = scmp.eq.s32.totalorder 0, 0
    // Predicated region
    $region22: #{tpu_custom_call.1} parent=1 // pred_check
      %p42 = pneg %p41
    $region23: #{tpu_custom_call.1} parent=1 // pred_check_branch
      %44 = sbr.rel (%p42) target = $region25
    $region24: #{tpu_custom_call.1} parent=1 // pred_region
      %45 = vst [vmem:[#allocation2] sm:$0xff] 0.0
    $region25: #{tpu_custom_call.1} parent=1 // pred_fallthru
      _
    %v46 = vld [vmem:[#allocation2] sm:$0xff]
    %v47 = vld [vmem:[#allocation3] sm:$0xff]
    %v48 = vld [vmem:[#allocation6] sm:$0xff]
    %v49 = vld [vmem:[#allocation6 + $0x8] sm:$0xff]
    %v50 = vld [vmem:[#allocation6 + $0x10] sm:$0xff]
    %v51 = vld [vmem:[#allocation6 + $0x18] sm:$0xff]
    %vm52 = vcmask 261120
    %v54 = vsel %vm52, %v47, 0
    %56 = vmatprep.subr.mxu0 0.0
    %57 = vmatpush1.msra.mxu0 %v48
    %58 = vmatprep.subr.mxu0 0.0
    %59 = vmatpush1.msra.mxu0 %v49
    %60 = vmatprep.subr.mxu0 0.0
    %61 = vmatpush1.msra.mxu0 %v50
    %62 = vmatprep.subr.mxu0 0.0
    %63 = vmatpush1.msra.mxu0 %v51
    %64 = vmatprep.subr.mxu0 0.0
    %65 = vmatpush1.msra.mxu0 0.0
    %66 = vmatprep.subr.mxu0 0.0
    %67 = vmatpush1.msra.mxu0 0.0
    %68 = vmatprep.subr.mxu0 0.0
    %69 = vmatpush1.msra.mxu0 0.0
    %70 = vmatprep.subr.mxu0 0.0
    %71 = vmatpush1.msra.mxu0 0.0
    %72 = vmatprep.subr.mxu0 0.0
    %73 = vmatpush1.msra.mxu0 0.0
    %74 = vmatprep.subr.mxu0 0.0
    %75 = vmatpush1.msra.mxu0 0.0
    %76 = vmatprep.subr.mxu0 0.0
    %77 = vmatpush1.msra.mxu0 0.0
    %78 = vmatprep.subr.mxu0 0.0
    %79 = vmatpush1.msra.mxu0 0.0
    %80 = vmatprep.subr.mxu0 0.0
    %81 = vmatpush1.msra.mxu0 0.0
    %82 = vmatprep.subr.mxu0 0.0
    %83 = vmatpush1.msra.mxu0 0.0
    %84 = vmatprep.subr.mxu0 0.0
    %85 = vmatpush1.msra.mxu0 0.0
    %86 = vmatprep.subr.mxu0 0.0
    %87 = vmatpush1.msra.mxu0 0.0
    %88 = vmatprep.subr.mxu0 0.0
    %89 = vmatpush1.msra.mxu0 0.0
    %90 = vmatprep.subr.mxu0 0.0
    %91 = vmatpush1.msra.mxu0 0.0
    %92 = vmatprep.subr.mxu0 0.0
    %93 = vmatpush1.msra.mxu0 0.0
    %94 = vmatprep.subr.mxu0 0.0
    %95 = vmatpush1.msra.mxu0 0.0
    %96 = vmatprep.subr.mxu0 0.0
    %97 = vmatpush1.msra.mxu0 0.0
    %98 = vmatprep.subr.mxu0 0.0
    %99 = vmatpush1.msra.mxu0 0.0
    %100 = vmatprep.subr.mxu0 0.0
    %101 = vmatpush1.msra.mxu0 0.0
    %102 = vmatprep.subr.mxu0 0.0
    %103 = vmatpush1.msra.mxu0 0.0
    %104 = vmatprep.subr.mxu0 0.0
    %105 = vmatpush1.msra.mxu0 0.0
    %106 = vmatprep.subr.mxu0 0.0
    %107 = vmatpush1.msra.mxu0 0.0
    %108 = vmatprep.subr.mxu0 0.0
    %109 = vmatpush1.msra.mxu0 0.0
    %110 = vmatprep.subr.mxu0 0.0
    %111 = vmatpush1.msra.mxu0 0.0
    %112 = vmatprep.subr.mxu0 0.0
    %113 = vmatpush1.msra.mxu0 0.0
    %114 = vmatprep.subr.mxu0 0.0
    %115 = vmatpush1.msra.mxu0 0.0
    %116 = vmatprep.subr.mxu0 0.0
    %117 = vmatpush1.msra.mxu0 0.0
    %118 = vmatprep.subr.mxu0 0.0
    %119 = vmatpush1.msra.mxu0 0.0
    %120 = vmatprep.mubr.f32.mxu0 0.0
    %121 = vmatmul.mubr.f32.gmra.mrb[0].mxu0 %v54
    %v122 = vpop.f32.mrb[0].mxu0
    %v123 = vadd.f32 0.0, %v122
    %v124 = vpop.f32.mrb[0].mxu0
    %125 = vdwg.mxu0
    %v126 = vadd.f32 %v46, %v123
    %127 = vst [vmem:[#allocation2] sm:$0xff] %v126
    // Predicated region
    $region26: #{tpu_custom_call.1} parent=1 // pred_check
      %p128 = pneg %p41
    $region27: #{tpu_custom_call.1} parent=1 // pred_check_branch
      %130 = sbr.rel (%p128) target = $region29
    $region28: #{tpu_custom_call.1} parent=1 // pred_region
      %v131 = vld [vmem:[#allocation2] sm:$0xff]
      %v132 = vld [vmem:[%s2] sm:$0x1]
      %v134 = vlaneseq
      %v135 = vshrl.u32 %v134, 7
      %v136 = vsub.s32 0, %v135
      %v137 = vrot.slane %v132, %v136
      %v139 = vadd.f32 %v131, %v137
      %140 = vmax.xlane.f32.xlu0 %v139
      %v141 = vpop.xlane.xlu0 %140
      %v142 = vsub.f32 %v139, %v141
      %v143 = vmul.f32 %v142, 1.442695
      %v144 = vpow.pop %v143
      %145 = vadd.xlane.f32.xlu0 %v144
      %v146 = vpop.xlane.xlu0 %145
      %v147 = vrcp.pop %v146
      %v148 = vmul.f32 %v144, %v147
      %vm149 = vcmask 130048
      %150 = vst.msk [vmem:[#allocation8] sm:$0xff] %vm149, %v148
    $region29: #{tpu_custom_call.1} parent=1 // pred_fallthru
      _
    // Predicated region
    $region30: #{tpu_custom_call.1} parent=1 // pred_check
      _
    $region31: #{tpu_custom_call.1} parent=1 // pred_check_branch
      %152 = sbr.rel (0) target = $region33
    $region32: #{tpu_custom_call.1} parent=1 // pred_region
      %s154 = ssub.s32 128, 128
      %155 = vsyncadd [#allocation5], %s154
      %s157 = sshll.u32 [#allocation8], 4
      %s158 = int_to_ptr.vmem [resolvable:$true] %s157
      %160 = dma.vmem_to_hbm [thread:$0]  %s158, 128, %s3, [#allocation5]
    $region33: #{tpu_custom_call.1} parent=1 // pred_fallthru
      _
    // Predicated region
    $region34: #{tpu_custom_call.1} parent=1 // pred_check
      _
    $region35: #{tpu_custom_call.1} parent=1 // pred_check_branch
      %162 = sbr.rel (0) target = $region37
    $region36: #{tpu_custom_call.1} parent=1 // pred_region
      %163 = dma.done [#allocation5], 128
    $region37: #{tpu_custom_call.1} parent=1 // pred_fallthru
      _
    %164 = vsyncpa [#allocation4], 1
    %165 = vsyncpa [#allocation7], 1
    %166 = vsyncpa [#allocation5], 1

// kernel: tpu_custom_call.1
$region0: #{tpu_custom_call.1}
  #allocation0 [shape = 'u32[]', space=smem, size = 0x4, offset = 0x4, fixed_abs, tag = 'smem constant byte address 0x4 - core index']
  #allocation1 [shape = 'u32[144,128]{1,0:T(1,128)}', space=vmem, size = 0x12000, scoped, tag = 'internal scratch']
  #allocation2 [shape = 'f32[8,128]{1,0:T(8,128)}', space=vmem, size = 0x1000, scoped, tag = 'scratch operand']
  %s0 = inlined_call_operand.hbm [shape: f32[8,32], index: 0, kind: input, shape index: {}]
  %s1 = inlined_call_operand.hbm [shape: f32[32,128], index: 1, kind: input, shape index: {}]
  %s2 = inlined_call_operand.vmem [shape: f32[1,128], index: 2, kind: input, shape index: {}]
  %s3 = inlined_call_operand.hbm [shape: f32[8,16], index: 3, kind: output, shape index: {}]
  %s4 = sld [smem:[#allocation0]]
  $region38: #{tpu_custom_call.1} parent=0
    _
  %s6 = ssub.s32 1, %s4
  %s7 = scalar_select 0, %s6, %s4
  $region1: #{tpu_custom_call.1} parent=0
    #allocation3 [shape = 'u8[4096]{0}', space=vmem, size = 0x1000, scoped, tag = 'input window, operand 0, single buffered']
    #allocation4 [shape = 's32[1]{0}', space=sflag, size = 0x4, scoped, tag = 'scoped memory for tpu_custom_call.1']
    #allocation5 [shape = 's32[1]{0}', space=sflag, size = 0x4, scoped, tag = 'scoped memory for tpu_custom_call.1']
    #allocation6 [shape = 'u8[16384]{0}', space=vmem, size = 0x4000, scoped, tag = 'input window, operand 1, single buffered']
    #allocation7 [shape = 's32[1]{0}', space=sflag, size = 0x4, scoped, tag = 'scoped memory for tpu_custom_call.1']
    #allocation8 [shape = 'u8[4096]{0}', space=vmem, size = 0x1000, scoped, tag = 'output window, operand 0, single buffered']
    %8 = vsyncpa [#allocation4], 0
    %9 = vsyncpa [#allocation7], 0
    %10 = vsyncpa [#allocation5], 0
    // Predicated region
    $region2: #{tpu_custom_call.1} parent=1 // pred_check
      _
    $region3: #{tpu_custom_call.1} parent=1 // pred_check_branch
      %12 = sbr.rel (0) target = $region5
    $region4: #{tpu_custom_call.1} parent=1 // pred_region
      %s14 = ssub.s32 128, 128
      %15 = vsyncadd [#allocation4], %s14
      %s17 = sshll.u32 [#allocation3], 4
      %s18 = int_to_ptr.vmem [resolvable:$true] %s17
      %20 = dma.hbm_to_vmem [thread:$0]  %s0, 128, %s18, [#allocation4]
    $region5: #{tpu_custom_call.1} parent=1 // pred_fallthru
      _
    // Predicated region
    $region6: #{tpu_custom_call.1} parent=1 // pred_check
      _
    $region7: #{tpu_custom_call.1} parent=1 // pred_check_branch
      %22 = sbr.rel (0) target = $region9
    $region8: #{tpu_custom_call.1} parent=1 // pred_region
      %s24 = ssub.s32 512, 512
      %25 = vsyncadd [#allocation7], %s24
      %s26 = sshll.u32 [#allocation6], 4
      %s27 = int_to_ptr.vmem [resolvable:$true] %s26
      %32 = dma.hbm_to_vmem [thread:$0]  %s1, 512, %s27, [#allocation7], 128, 128, 8
    $region9: #{tpu_custom_call.1} parent=1 // pred_fallthru
      _
    // Predicated region
    $region10: #{tpu_custom_call.1} parent=1 // pred_check
      _
    $region11: #{tpu_custom_call.1} parent=1 // pred_check_branch
      %34 = sbr.rel (0) target = $region13
    $region12: #{tpu_custom_call.1} parent=1 // pred_region
      _
    $region13: #{tpu_custom_call.1} parent=1 // pred_fallthru
      _
    // Predicated region
    $region14: #{tpu_custom_call.1} parent=1 // pred_check
      _
    $region15: #{tpu_custom_call.1} parent=1 // pred_check_branch
      %36 = sbr.rel (0) target = $region17
    $region16: #{tpu_custom_call.1} parent=1 // pred_region
      %37 = dma.done [#allocation4], 128
    $region17: #{tpu_custom_call.1} parent=1 // pred_fallthru
      _
    // Predicated region
    $region18: #{tpu_custom_call.1} parent=1 // pred_check
      _
    $region19: #{tpu_custom_call.1} parent=1 // pred_check_branch
      %39 = sbr.rel (0) target = $region21
    $region20: #{tpu_custom_call.1} parent=1 // pred_region
      %40 = dma.done [#allocation7], 512
    $region21: #{tpu_custom_call.1} parent=1 // pred_fallthru
      _
    %p41 = scmp.eq.s32.totalorder 0, 0
    // Predicated region
    $region22: #{tpu_custom_call.1} parent=1 // pred_check
      %p42 = pneg %p41
    $region23: #{tpu_custom_call.1} parent=1 // pred_check_branch
      %44 = sbr.rel (%p42) target = $region25
    $region24: #{tpu_custom_call.1} parent=1 // pred_region
      %45 = vst [vmem:[#allocation2] sm:$0xff] 0.0
    $region25: #{tpu_custom_call.1} parent=1 // pred_fallthru
      _
    %v46 = vld [vmem:[#allocation2] sm:$0xff]
    %v47 = vld [vmem:[#allocation3] sm:$0xff]
    %v48 = vld [vmem:[#allocation6] sm:$0xff]
    %v49 = vld [vmem:[#allocation6 + $0x8] sm:$0xff]
    %v50 = vld [vmem:[#allocation6 + $0x10] sm:$0xff]
    %v51 = vld [vmem:[#allocation6 + $0x18] sm:$0xff]
    %vm52 = vcmask 261120
    %v54 = vsel %vm52, %v47, 0
    %56 = vmatprep.subr.mxu0 0.0
    %57 = vmatpush1.msra.mxu0 %v48
    %58 = vmatprep.subr.mxu0 0.0
    %59 = vmatpush1.msra.mxu0 %v49
    %60 = vmatprep.subr.mxu0 0.0
    %61 = vmatpush1.msra.mxu0 %v50
    %62 = vmatprep.subr.mxu0 0.0
    %63 = vmatpush1.msra.mxu0 %v51
    %64 = vmatprep.subr.mxu0 0.0
    %65 = vmatpush1.msra.mxu0 0.0
    %66 = vmatprep.subr.mxu0 0.0
    %67 = vmatpush1.msra.mxu0 0.0
    %68 = vmatprep.subr.mxu0 0.0
    %69 = vmatpush1.msra.mxu0 0.0
    %70 = vmatprep.subr.mxu0 0.0
    %71 = vmatpush1.msra.mxu0 0.0
    %72 = vmatprep.subr.mxu0 0.0
    %73 = vmatpush1.msra.mxu0 0.0
    %74 = vmatprep.subr.mxu0 0.0
    %75 = vmatpush1.msra.mxu0 0.0
    %76 = vmatprep.subr.mxu0 0.0
    %77 = vmatpush1.msra.mxu0 0.0
    %78 = vmatprep.subr.mxu0 0.0
    %79 = vmatpush1.msra.mxu0 0.0
    %80 = vmatprep.subr.mxu0 0.0
    %81 = vmatpush1.msra.mxu0 0.0
    %82 = vmatprep.subr.mxu0 0.0
    %83 = vmatpush1.msra.mxu0 0.0
    %84 = vmatprep.subr.mxu0 0.0
    %85 = vmatpush1.msra.mxu0 0.0
    %86 = vmatprep.subr.mxu0 0.0
    %87 = vmatpush1.msra.mxu0 0.0
    %88 = vmatprep.subr.mxu0 0.0
    %89 = vmatpush1.msra.mxu0 0.0
    %90 = vmatprep.subr.mxu0 0.0
    %91 = vmatpush1.msra.mxu0 0.0
    %92 = vmatprep.subr.mxu0 0.0
    %93 = vmatpush1.msra.mxu0 0.0
    %94 = vmatprep.subr.mxu0 0.0
    %95 = vmatpush1.msra.mxu0 0.0
    %96 = vmatprep.subr.mxu0 0.0
    %97 = vmatpush1.msra.mxu0 0.0
    %98 = vmatprep.subr.mxu0 0.0
    %99 = vmatpush1.msra.mxu0 0.0
    %100 = vmatprep.subr.mxu0 0.0
    %101 = vmatpush1.msra.mxu0 0.0
    %102 = vmatprep.subr.mxu0 0.0
    %103 = vmatpush1.msra.mxu0 0.0
    %104 = vmatprep.subr.mxu0 0.0
    %105 = vmatpush1.msra.mxu0 0.0
    %106 = vmatprep.subr.mxu0 0.0
    %107 = vmatpush1.msra.mxu0 0.0
    %108 = vmatprep.subr.mxu0 0.0
    %109 = vmatpush1.msra.mxu0 0.0
    %110 = vmatprep.subr.mxu0 0.0
    %111 = vmatpush1.msra.mxu0 0.0
    %112 = vmatprep.subr.mxu0 0.0
    %113 = vmatpush1.msra.mxu0 0.0
    %114 = vmatprep.subr.mxu0 0.0
    %115 = vmatpush1.msra.mxu0 0.0
    %116 = vmatprep.subr.mxu0 0.0
    %117 = vmatpush1.msra.mxu0 0.0
    %118 = vmatprep.subr.mxu0 0.0
    %119 = vmatpush1.msra.mxu0 0.0
    %120 = vmatprep.mubr.f32.mxu0 0.0
    %121 = vmatmul.mubr.f32.gmra.mrb[0].mxu0 %v54
    %v122 = vpop.f32.mrb[0].mxu0
    %v123 = vadd.f32 0.0, %v122
    %v124 = vpop.f32.mrb[0].mxu0
    %125 = vdwg.mxu0
    %v126 = vadd.f32 %v46, %v123
    %127 = vst [vmem:[#allocation2] sm:$0xff] %v126
    // Predicated region
    $region26: #{tpu_custom_call.1} parent=1 // pred_check
      %p128 = pneg %p41
    $region27: #{tpu_custom_call.1} parent=1 // pred_check_branch
      %130 = sbr.rel (%p128) target = $region29
    $region28: #{tpu_custom_call.1} parent=1 // pred_region
      %v131 = vld [vmem:[#allocation2] sm:$0xff]
      %v132 = vld [vmem:[%s2] sm:$0x1]
      %v134 = vlaneseq
      %v135 = vshrl.u32 %v134, 7
      %v136 = vsub.s32 0, %v135
      %v137 = vrot.slane %v132, %v136
      %v139 = vadd.f32 %v131, %v137
      %140 = vmax.xlane.f32.xlu0 %v139
      %v141 = vpop.xlane.xlu0 %140
      %v142 = vsub.f32 %v139, %v141
      %v143 = vmul.f32 %v142, 1.442695
      %v144 = vpow.pop %v143
      %145 = vadd.xlane.f32.xlu0 %v144
      %v146 = vpop.xlane.xlu0 %145
      %v147 = vrcp.pop %v146
      %v148 = vmul.f32 %v144, %v147
      %vm149 = vcmask 130048
      %150 = vst.msk [vmem:[#allocation8] sm:$0xff] %vm149, %v148
    $region29: #{tpu_custom_call.1} parent=1 // pred_fallthru
      _
    // Predicated region
    $region30: #{tpu_custom_call.1} parent=1 // pred_check
      _
    $region31: #{tpu_custom_call.1} parent=1 // pred_check_branch
      %152 = sbr.rel (0) target = $region33
    $region32: #{tpu_custom_call.1} parent=1 // pred_region
      %s154 = ssub.s32 128, 128
      %155 = vsyncadd [#allocation5], %s154
      %s157 = sshll.u32 [#allocation8], 4
      %s158 = int_to_ptr.vmem [resolvable:$true] %s157
      %160 = dma.vmem_to_hbm [thread:$0]  %s158, 128, %s3, [#allocation5]
    $region33: #{tpu_custom_call.1} parent=1 // pred_fallthru
      _
    // Predicated region
    $region34: #{tpu_custom_call.1} parent=1 // pred_check
      _
    $region35: #{tpu_custom_call.1} parent=1 // pred_check_branch
      %162 = sbr.rel (0) target = $region37
    $region36: #{tpu_custom_call.1} parent=1 // pred_region
      %163 = dma.done [#allocation5], 128
    $region37: #{tpu_custom_call.1} parent=1 // pred_fallthru
      _
    %164 = vsyncpa [#allocation4], 1
    %165 = vsyncpa [#allocation7], 1
    %166 = vsyncpa [#allocation5], 1

</llo_original>
